<compile_context>
chip_gen: v7x
topology: tpu7x:2x2x1
jax: 0.10.0
libtpu: 0.0.40
codegen_flags: <defaults>
</compile_context>

<pallas_src>
import functools

import jax
import jax.numpy as jnp
from jax.experimental import pallas as pl
from jax.experimental.pallas import tpu as pltpu

_LANES = 128
_ACC_ROWS = 8
# Working-set budget: 2x double-buffered (logits + targets) blocks plus ~4
# block-sized in-kernel temporaries (exp / probs / one-hot selects).  Kept well
# under the 48 MiB scoped limit and v7x's 64 MiB physical VMEM per TensorCore.
_VMEM_WORKING_SET_BUDGET = 36 * 1024 * 1024
_MAX_S_TILE = 2048                       # 2048 sublanes * 128 lanes per block
_VMEM_LIMIT_BYTES = 48 * 1024 * 1024     # explicit scoped limit (v7x-safe)


def _dice_kernel(logits_ref, targets_ref, loss_ref, inter_acc, union_acc, *,
                 epsilon, hw, mask_mode, approx_recip):
    # logits_ref : (1, C, s_tile, 128) f32
    # targets_ref: (1, s_tile, 128)    int8 / int32
    # loss_ref   : (1, 8, 128)         f32   (per-batch loss, broadcast)
    # inter_acc / union_acc : (C, acc_rows, 128) f32 lane-resident partials
    C = logits_ref.shape[1]
    s_tile = logits_ref.shape[2]
    t = pl.program_id(1)

    @pl.when(t == 0)
    def _zero():
        inter_acc[...] = jnp.zeros_like(inter_acc)
        union_acc[...] = jnp.zeros_like(union_acc)

    x = logits_ref[0]                                # (C, S, 128) f32
    tgt = targets_ref[0].astype(jnp.int32)           # (S, 128)

    if mask_mode != "none":
        # Global pixel index of every lane in this tile (static hw bound).
        base = t * (s_tile * _LANES)
        row = jax.lax.broadcasted_iota(jnp.int32, (s_tile, _LANES), 0)
        col = jax.lax.broadcasted_iota(jnp.int32, (s_tile, _LANES), 1)
        valid = (base + row * _LANES + col) < hw      # (S, 128) bool

    # Per-pixel softmax over the leading (untiled) class axis: VALU max/adds,
    # one EUP exp per class-pixel, a single reciprocal per pixel.
    m = jnp.max(x, axis=0)                            # (S, 128)
    e = jnp.exp(x - m)                                # (C, S, 128)
    if mask_mode == "full":
        # Boundary-block tails are undefined (possibly NaN/Inf): select, don't
        # multiply, so garbage cannot reach the accumulators.
        e = jnp.where(valid[None, :, :], e, 0.0)
        denom = jnp.sum(e, axis=0)                    # (S, 128)
        inv = pl.reciprocal(jnp.where(valid, denom, 1.0), approx=approx_recip)
        tgt = jnp.where(valid, tgt, -1)
    elif mask_mode == "cheap":
        # Invalid pixels carry zero logits / target == -1 from the wrapper's
        # lane pad: masking the (S,128) reciprocal alone is enough (no
        # (C,S,128) select).
        denom = jnp.sum(e, axis=0)
        inv = jnp.where(valid, pl.reciprocal(denom, approx=approx_recip), 0.0)
    else:
        denom = jnp.sum(e, axis=0)
        inv = pl.reciprocal(denom, approx=approx_recip)
    probs = e * inv                                   # (C, S, 128)

    # One-hot as a boolean compare; never materialized as f32.
    class_ids = jax.lax.broadcasted_iota(jnp.int32, (C, s_tile, _LANES), 0)
    onehot = class_ids == tgt                         # (C, S, 128) bool

    ic = jnp.where(onehot, probs, 0.0)                # intersection terms
    uc = jnp.where(onehot, probs + 1.0, probs)        # union terms

    # Accumulate into vreg-aligned (C, 8, 128) partials: summing over the
    # groups-of-8-sublanes axis is pure VALU vreg adds (no per-tile XLU).
    if s_tile % _ACC_ROWS == 0:
        inter_acc[...] += ic.reshape(C, s_tile // _ACC_ROWS, _ACC_ROWS,
                                     _LANES).sum(axis=1)
        union_acc[...] += uc.reshape(C, s_tile // _ACC_ROWS, _ACC_ROWS,
                                     _LANES).sum(axis=1)
    else:
        # Tiny-image fallback: single tile with < 8 sublane rows.
        inter_acc[...] += ic.sum(axis=1, keepdims=True)
        union_acc[...] += uc.sum(axis=1, keepdims=True)

    @pl.when(t == pl.num_programs(1) - 1)
    def _finalize():
        inter = inter_acc[...].sum(axis=1).sum(axis=1, keepdims=True)   # (C,1)
        union = union_acc[...].sum(axis=1).sum(axis=1, keepdims=True)   # (C,1)
        dice = (2.0 * inter + epsilon) / (union + epsilon)              # (C,1)
        mean_dice = jnp.sum(dice, axis=0, keepdims=True) * (1.0 / C)    # (1,1)
        loss = (1.0 - mean_dice).reshape(1, 1, 1)
        loss_ref[...] = jnp.broadcast_to(loss, loss_ref.shape)


def _pick_s_tile(s_total, C, tgt_bytes):
    # Budget formula: ~6 block-sized f32 copies of the logits tile (2 for the
    # double-buffered input + ~4 in-kernel temporaries) and 2 target blocks.
    bytes_per_row = _LANES * (6 * 4 * C + 2 * tgt_bytes)
    budget = _VMEM_WORKING_SET_BUDGET // bytes_per_row
    budget = max(32, min(_MAX_S_TILE, budget))
    if s_total <= budget:
        return s_total                       # single full-extent tile
    s_tile = (budget // 32) * 32             # 32: legal for f32 and int8 tiles
    # Prefer the largest multiple-of-32 divisor of s_total not much smaller
    # than the budget: exact tiling -> no ragged boundary block, no masking.
    d = s_tile
    while d >= 32:
        if s_total % d == 0:
            if 2 * d >= s_tile:
                return d
            break
        d -= 32
    return s_tile


def dice_loss(logits, targets, *, epsilon=1e-6, reduction="mean",
              approx_reciprocal=False, s_tile_override=None):
    """Pallas TPU implementation of DiceLoss.forward.

    logits:  (N, C, H, W) floating point
    targets: (N, H, W)    integer class indices in [0, C)
    """
    N, C, H, W = logits.shape
    hw = H * W
    s_total = -(-hw // _LANES)               # 128-lane rows covering HW

    use_int8 = C <= 127                      # narrow targets: 4x less DMA
    tgt_dtype = jnp.int8 if use_int8 else jnp.int32
    tgt_bytes = 1 if use_int8 else 4

    if s_tile_override is not None:
        # Testing knob; if < s_total it should be a multiple of 32.
        s_tile = min(int(s_tile_override), s_total)
    else:
        s_tile = _pick_s_tile(s_total, C, tgt_bytes)
    num_tiles = -(-s_total // s_tile)

    ragged_rows = (s_total % s_tile) != 0    # ragged Pallas boundary block
    lane_pad = s_total * _LANES - hw         # 0..127 trailing pad pixels
    if ragged_rows:
        mask_mode = "full"                   # NaN-safe select masking
    elif lane_pad:
        mask_mode = "cheap"                  # mask folded into the reciprocal
    else:
        mask_mode = "none"                   # exact tiling: zero mask cost

    acc_rows = _ACC_ROWS if s_tile % _ACC_ROWS == 0 else 1

    # NOTE: casting logits to bf16 here (upcast before exp in-kernel) halves
    # HBM traffic on bandwidth-bound v5e/v6e but breaks exact f32 parity with
    # the PyTorch module; kept f32.
    logits_f = logits.reshape(N, C, hw).astype(jnp.float32)
    targets_f = targets.reshape(N, hw).astype(tgt_dtype)
    if lane_pad:
        # Only a <=127-element lane pad (needed for the 128-lane repack).  The
        # old full pad to a multiple of s_tile*128 - an extra HBM round trip
        # of the whole logits tensor - is gone; ragged tiles are masked
        # in-kernel by global pixel index instead.
        logits_f = jnp.pad(logits_f, ((0, 0), (0, 0), (0, lane_pad)))
        targets_f = jnp.pad(targets_f, ((0, 0), (0, lane_pad)),
                            constant_values=-1)
    logits_f = logits_f.reshape(N, C, s_total, _LANES)
    targets_f = targets_f.reshape(N, s_total, _LANES)

    kernel = functools.partial(
        _dice_kernel, epsilon=float(epsilon), hw=hw, mask_mode=mask_mode,
        approx_recip=bool(approx_reciprocal))

    per_batch = pl.pallas_call(
        kernel,
        out_shape=jax.ShapeDtypeStruct((N, _ACC_ROWS, _LANES), jnp.float32),
        grid_spec=pltpu.PrefetchScalarGridSpec(
            num_scalar_prefetch=0,
            grid=(N, num_tiles),
            in_specs=[
                pl.BlockSpec((1, C, s_tile, _LANES),
                             lambda b, t: (b, 0, t, 0)),
                pl.BlockSpec((1, s_tile, _LANES), lambda b, t: (b, t, 0)),
            ],
            out_specs=pl.BlockSpec((1, _ACC_ROWS, _LANES),
                                   lambda b, t: (b, 0, 0)),
            scratch_shapes=[
                pltpu.VMEM((C, acc_rows, _LANES), jnp.float32),  # intersection
                pltpu.VMEM((C, acc_rows, _LANES), jnp.float32),  # union
            ],
        ),
        compiler_params=pltpu.CompilerParams(
            dimension_semantics=("parallel", "arbitrary"),
            vmem_limit_bytes=_VMEM_LIMIT_BYTES,
        ),
    )(logits_f, targets_f)

    loss = per_batch[:, 0, 0]                # (N,)
    if reduction == "mean":
        return jnp.mean(loss)
    elif reduction == "sum":
        return jnp.sum(loss)
    return loss


def _dice_ref(logits, targets, epsilon, reduction):
    # Pure-JAX reference, same math as the PyTorch module.
    C = logits.shape[1]
    probs = jax.nn.softmax(logits.astype(jnp.float32), axis=1)
    onehot = jax.nn.one_hot(targets, C, dtype=jnp.float32).transpose(0, 3, 1, 2)
    inter = jnp.sum(probs * onehot, axis=(2, 3))
    union = jnp.sum(probs + onehot, axis=(2, 3))
    dice = (2.0 * inter + epsilon) / (union + epsilon)
    loss = 1.0 - jnp.mean(dice, axis=1)
    if reduction == "mean":
        return jnp.mean(loss)
    elif reduction == "sum":
        return jnp.sum(loss)
    return loss


if __name__ == "__main__":
    key = jax.random.PRNGKey(0)
    k1, k2, k3, k4, k5, k6 = jax.random.split(key, 6)

    # Case 1: small, lane-aligned (H*W = 256): single tile, no masking.
    N, C, H, W = 2, 4, 16, 16
    logits = jax.random.normal(k1, (N, C, H, W), dtype=jnp.float32)
    targets = jax.random.randint(k2, (N, H, W), 0, C, dtype=jnp.int32)
    out = jax.block_until_ready(dice_loss(logits, targets, epsilon=1e-6,
                                          reduction="mean"))
    ref = _dice_ref(logits, targets, 1e-6, "mean")
    assert jnp.allclose(out, ref, atol=2e-5, rtol=2e-5), (out, ref)

    # Case 2: H*W = 130 (not a multiple of 128): lane pad + "cheap" masking;
    # reduction='none' exercises the per-batch output path.
    N2, C2, H2, W2 = 3, 5, 10, 13
    logits2 = jax.random.normal(k3, (N2, C2, H2, W2), dtype=jnp.float32)
    targets2 = jax.random.randint(k4, (N2, H2, W2), 0, C2, dtype=jnp.int32)
    out2 = jax.block_until_ready(dice_loss(logits2, targets2, epsilon=1e-6,
                                           reduction="none"))
    ref2 = _dice_ref(logits2, targets2, 1e-6, "none")
    assert jnp.allclose(out2, ref2, atol=2e-5, rtol=2e-5), (out2, ref2)

    # Case 3: forced small tile -> multi-tile spatial reduction with a ragged
    # boundary block ("full" NaN-safe masking) and int8 targets.
    N3, C3, H3, W3 = 2, 3, 96, 96
    logits3 = jax.random.normal(k5, (N3, C3, H3, W3), dtype=jnp.float32)
    targets3 = jax.random.randint(k6, (N3, H3, W3), 0, C3, dtype=jnp.int32)
    out3 = jax.block_until_ready(dice_loss(logits3, targets3, epsilon=1e-6,
                                           reduction="sum",
                                           s_tile_override=32))
    ref3 = _dice_ref(logits3, targets3, 1e-6, "sum")
    assert jnp.allclose(out3, ref3, atol=1e-4, rtol=1e-4), (out3, ref3)

    print("KERNEL_OK")
</pallas_src>

<mosaic_0001>
module attributes {stable_mosaic.version = 11 : i64} {
  func.func @_dice_kernel(%arg0: i32, %arg1: i32, %arg2: memref<1x4x2x128xf32, #tpu.memory_space<vmem>>, %arg3: memref<1x2x128xi8, #tpu.memory_space<vmem>>, %arg4: memref<1x8x128xf32, #tpu.memory_space<vmem>>, %arg5: memref<4x1x128xf32, #tpu.memory_space<vmem>>, %arg6: memref<4x1x128xf32, #tpu.memory_space<vmem>>) attributes {dimension_semantics = [#tpu.dimension_semantics<parallel>, #tpu.dimension_semantics<arbitrary>], iteration_bounds = array<i64: 2, 1>, scalar_prefetch = 0 : i64, scratch_operands = 2 : i64, tpu.core_type = #tpu.core_type<tc>, window_params = [{transform_indices = @transform_0, window_bounds = array<i64: 1, 4, 2, 128>}, {transform_indices = @transform_1, window_bounds = array<i64: 1, 2, 128>}, {transform_indices = @transform_2, window_bounds = array<i64: 1, 8, 128>}]} {
    %c0_i32 = arith.constant 0 : i32
    %0 = arith.cmpi eq, %arg1, %c0_i32 : i32
    %1 = arith.extui %0 : i1 to i32
    %c0_i32_0 = arith.constant 0 : i32
    %2 = arith.cmpi ne, %1, %c0_i32_0 : i32
    scf.if %2 {
      %cst_26 = arith.constant 0.000000e+00 : f32
      %40 = vector.broadcast %cst_26 : f32 to vector<4x1x128xf32>
      %c0_27 = arith.constant 0 : index
      %c0_28 = arith.constant 0 : index
      %c0_29 = arith.constant 0 : index
      %41 = vector.load %arg5[%c0_27, %c0_28, %c0_29] : memref<4x1x128xf32, #tpu.memory_space<vmem>>, vector<4x1x128xf32>
      tpu.vector_store %arg5[%c0_27, %c0_28, %c0_29], %40 {strides = array<i32>} : memref<4x1x128xf32, #tpu.memory_space<vmem>>, vector<4x1x128xf32>,
      %cst_30 = arith.constant 0.000000e+00 : f32
      %42 = vector.broadcast %cst_30 : f32 to vector<4x1x128xf32>
      %c0_31 = arith.constant 0 : index
      %c0_32 = arith.constant 0 : index
      %c0_33 = arith.constant 0 : index
      %43 = vector.load %arg6[%c0_31, %c0_32, %c0_33] : memref<4x1x128xf32, #tpu.memory_space<vmem>>, vector<4x1x128xf32>
      tpu.vector_store %arg6[%c0_31, %c0_32, %c0_33], %42 {strides = array<i32>} : memref<4x1x128xf32, #tpu.memory_space<vmem>>, vector<4x1x128xf32>,
    } else {
    }
    %c0 = arith.constant 0 : index
    %c0_1 = arith.constant 0 : index
    %c0_2 = arith.constant 0 : index
    %c0_3 = arith.constant 0 : index
    %3 = vector.load %arg2[%c0, %c0_1, %c0_2, %c0_3] : memref<1x4x2x128xf32, #tpu.memory_space<vmem>>, vector<1x4x2x128xf32>
    %4 = vector.shape_cast %3 : vector<1x4x2x128xf32> to vector<4x2x128xf32>
    %c0_4 = arith.constant 0 : index
    %c0_5 = arith.constant 0 : index
    %c0_6 = arith.constant 0 : index
    %5 = vector.load %arg3[%c0_4, %c0_5, %c0_6] : memref<1x2x128xi8, #tpu.memory_space<vmem>>, vector<1x2x128xi8>
    %6 = vector.shape_cast %5 : vector<1x2x128xi8> to vector<2x128xi8>
    %7 = arith.extsi %6 : vector<2x128xi8> to vector<2x128xi32>
    %cst = arith.constant dense<0xFF800000> : vector<2x128xf32>
    %8 = vector.multi_reduction <maximumf>, %4, %cst [0] : vector<4x2x128xf32> to vector<2x128xf32>
    %9 = vector.shape_cast %8 : vector<2x128xf32> to vector<1x2x128xf32>
    %10 = vector.broadcast %9 : vector<1x2x128xf32> to vector<4x2x128xf32>
    %11 = arith.subf %4, %10 : vector<4x2x128xf32>
    %12 = math.exp %11 : vector<4x2x128xf32>
    %cst_7 = arith.constant dense<0.000000e+00> : vector<2x128xf32>
    %13 = vector.multi_reduction <add>, %12, %cst_7 [0] : vector<4x2x128xf32> to vector<2x128xf32>
    %14 = tpu.reciprocal %13 : vector<2x128xf32> -> vector<2x128xf32>
    %15 = vector.shape_cast %14 : vector<2x128xf32> to vector<1x2x128xf32>
    %16 = vector.broadcast %15 : vector<1x2x128xf32> to vector<4x2x128xf32>
    %17 = arith.mulf %12, %16 : vector<4x2x128xf32>
    %18 = tpu.iota {dimensions = array<i32: 0>} : vector<4x2x128xi32>
    %19 = vector.shape_cast %7 : vector<2x128xi32> to vector<1x2x128xi32>
    %20 = vector.broadcast %19 : vector<1x2x128xi32> to vector<4x2x128xi32>
    %21 = arith.cmpi eq, %18, %20 : vector<4x2x128xi32>
    %cst_8 = arith.constant 0.000000e+00 : f32
    %22 = vector.broadcast %cst_8 : f32 to vector<4x2x128xf32>
    %23 = arith.select %21, %17, %22 : vector<4x2x128xi1>, vector<4x2x128xf32>
    %cst_9 = arith.constant 1.000000e+00 : f32
    %24 = vector.broadcast %cst_9 : f32 to vector<4x2x128xf32>
    %25 = arith.addf %17, %24 : vector<4x2x128xf32>
    %26 = arith.select %21, %25, %17 : vector<4x2x128xi1>, vector<4x2x128xf32>
    %c0_10 = arith.constant 0 : index
    %c0_11 = arith.constant 0 : index
    %c0_12 = arith.constant 0 : index
    %27 = vector.load %arg5[%c0_10, %c0_11, %c0_12] : memref<4x1x128xf32, #tpu.memory_space<vmem>>, vector<4x1x128xf32>
    %cst_13 = arith.constant dense<0.000000e+00> : vector<4x128xf32>
    %28 = vector.multi_reduction <add>, %23, %cst_13 [1] : vector<4x2x128xf32> to vector<4x128xf32>
    %29 = vector.shape_cast %28 : vector<4x128xf32> to vector<4x1x128xf32>
    %30 = arith.addf %27, %29 : vector<4x1x128xf32>
    %c0_14 = arith.constant 0 : index
    %c0_15 = arith.constant 0 : index
    %c0_16 = arith.constant 0 : index
    %31 = vector.load %arg5[%c0_14, %c0_15, %c0_16] : memref<4x1x128xf32, #tpu.memory_space<vmem>>, vector<4x1x128xf32>
    tpu.vector_store %arg5[%c0_14, %c0_15, %c0_16], %30 {strides = array<i32>} : memref<4x1x128xf32, #tpu.memory_space<vmem>>, vector<4x1x128xf32>,
    %c0_17 = arith.constant 0 : index
    %c0_18 = arith.constant 0 : index
    %c0_19 = arith.constant 0 : index
    %32 = vector.load %arg6[%c0_17, %c0_18, %c0_19] : memref<4x1x128xf32, #tpu.memory_space<vmem>>, vector<4x1x128xf32>
    %cst_20 = arith.constant dense<0.000000e+00> : vector<4x128xf32>
    %33 = vector.multi_reduction <add>, %26, %cst_20 [1] : vector<4x2x128xf32> to vector<4x128xf32>
    %34 = vector.shape_cast %33 : vector<4x128xf32> to vector<4x1x128xf32>
    %35 = arith.addf %32, %34 : vector<4x1x128xf32>
    %c0_21 = arith.constant 0 : index
    %c0_22 = arith.constant 0 : index
    %c0_23 = arith.constant 0 : index
    %36 = vector.load %arg6[%c0_21, %c0_22, %c0_23] : memref<4x1x128xf32, #tpu.memory_space<vmem>>, vector<4x1x128xf32>
    tpu.vector_store %arg6[%c0_21, %c0_22, %c0_23], %35 {strides = array<i32>} : memref<4x1x128xf32, #tpu.memory_space<vmem>>, vector<4x1x128xf32>,
    %c0_i32_24 = arith.constant 0 : i32
    %37 = arith.cmpi eq, %arg1, %c0_i32_24 : i32
    %38 = arith.extui %37 : i1 to i32
    %c0_i32_25 = arith.constant 0 : i32
    %39 = arith.cmpi ne, %38, %c0_i32_25 : i32
    scf.if %39 {
      %c0_26 = arith.constant 0 : index
      %c0_27 = arith.constant 0 : index
      %c0_28 = arith.constant 0 : index
      %40 = vector.load %arg5[%c0_26, %c0_27, %c0_28] : memref<4x1x128xf32, #tpu.memory_space<vmem>>, vector<4x1x128xf32>
      %cst_29 = arith.constant dense<0.000000e+00> : vector<4x128xf32>
      %41 = vector.multi_reduction <add>, %40, %cst_29 [1] : vector<4x1x128xf32> to vector<4x128xf32>
      %cst_30 = arith.constant dense<0.000000e+00> : vector<4xf32>
      %42 = vector.multi_reduction <add>, %41, %cst_30 [1] : vector<4x128xf32> to vector<4xf32>
      %43 = vector.shape_cast %42 : vector<4xf32> to vector<4x1xf32>
      %c0_31 = arith.constant 0 : index
      %c0_32 = arith.constant 0 : index
      %c0_33 = arith.constant 0 : index
      %44 = vector.load %arg6[%c0_31, %c0_32, %c0_33] : memref<4x1x128xf32, #tpu.memory_space<vmem>>, vector<4x1x128xf32>
      %cst_34 = arith.constant dense<0.000000e+00> : vector<4x128xf32>
      %45 = vector.multi_reduction <add>, %44, %cst_34 [1] : vector<4x1x128xf32> to vector<4x128xf32>
      %cst_35 = arith.constant dense<0.000000e+00> : vector<4xf32>
      %46 = vector.multi_reduction <add>, %45, %cst_35 [1] : vector<4x128xf32> to vector<4xf32>
      %47 = vector.shape_cast %46 : vector<4xf32> to vector<4x1xf32>
      %cst_36 = arith.constant 2.000000e+00 : f32
      %48 = vector.broadcast %cst_36 : f32 to vector<4x1xf32>
      %49 = arith.mulf %48, %43 : vector<4x1xf32>
      %cst_37 = arith.constant 9.99999997E-7 : f32
      %50 = vector.broadcast %cst_37 : f32 to vector<4x1xf32>
      %51 = arith.addf %49, %50 : vector<4x1xf32>
      %cst_38 = arith.constant 9.99999997E-7 : f32
      %52 = vector.broadcast %cst_38 : f32 to vector<4x1xf32>
      %53 = arith.addf %47, %52 : vector<4x1xf32>
      %54 = arith.divf %51, %53 : vector<4x1xf32>
      %cst_39 = arith.constant dense<0.000000e+00> : vector<1xf32>
      %55 = vector.multi_reduction <add>, %54, %cst_39 [0] : vector<4x1xf32> to vector<1xf32>
      %56 = vector.shape_cast %55 : vector<1xf32> to vector<1x1xf32>
      %cst_40 = arith.constant 2.500000e-01 : f32
      %57 = vector.broadcast %cst_40 : f32 to vector<1x1xf32>
      %58 = arith.mulf %56, %57 : vector<1x1xf32>
      %cst_41 = arith.constant 1.000000e+00 : f32
      %59 = vector.broadcast %cst_41 : f32 to vector<1x1xf32>
      %60 = arith.subf %59, %58 : vector<1x1xf32>
      %61 = vector.shape_cast %60 : vector<1x1xf32> to vector<1x1x1xf32>
      %62 = vector.shape_cast %61 : vector<1x1x1xf32> to vector<1x1x1xf32>
      %63 = vector.broadcast %62 : vector<1x1x1xf32> to vector<1x8x128xf32>
      %c0_42 = arith.constant 0 : index
      %c0_43 = arith.constant 0 : index
      %c0_44 = arith.constant 0 : index
      %64 = vector.load %arg4[%c0_42, %c0_43, %c0_44] : memref<1x8x128xf32, #tpu.memory_space<vmem>>, vector<1x8x128xf32>
      tpu.vector_store %arg4[%c0_42, %c0_43, %c0_44], %63 {strides = array<i32>} : memref<1x8x128xf32, #tpu.memory_space<vmem>>, vector<1x8x128xf32>,
    } else {
    }
    return
  }
  func.func @transform_0(%arg0: i32, %arg1: i32) -> (i32, i32, i32, i32) {
    %c0_i32 = arith.constant 0 : i32
    %c0_i32_0 = arith.constant 0 : i32
    %c0_i32_1 = arith.constant 0 : i32
    return %arg0, %c0_i32, %arg1, %c0_i32_0 : i32, i32, i32, i32
  }
  func.func @transform_1(%arg0: i32, %arg1: i32) -> (i32, i32, i32) {
    %c0_i32 = arith.constant 0 : i32
    %c0_i32_0 = arith.constant 0 : i32
    return %arg0, %arg1, %c0_i32 : i32, i32, i32
  }
  func.func @transform_2(%arg0: i32, %arg1: i32) -> (i32, i32, i32) {
    %c0_i32 = arith.constant 0 : i32
    %c0_i32_0 = arith.constant 0 : i32
    %c0_i32_1 = arith.constant 0 : i32
    return %arg0, %c0_i32, %c0_i32_0 : i32, i32, i32
  }
}

</mosaic_0001>

<llo_original>
// kernel: tpu_custom_call.1
$region0: #{tpu_custom_call.1}
  #allocation0 [shape = 'u32[]', space=smem, size = 0x4, offset = 0x4, fixed_abs, tag = 'smem constant byte address 0x4 - core index']
  #allocation1 [shape = 'u32[144,128]{1,0:T(1,128)}', space=vmem, size = 0x12000, scoped, tag = 'internal scratch']
  #allocation2 [shape = 'f32[4,1,128]{2,1,0:T(1,128)}', space=vmem, size = 0x800, scoped, tag = 'scratch operand']
  #allocation3 [shape = 'f32[4,1,128]{2,1,0:T(1,128)}', space=vmem, size = 0x800, scoped, tag = 'scratch operand']
  %s0 = inlined_call_operand.hbm [shape: f32[2,4,2,128], index: 0, kind: input, shape index: {}]
  %s1 = inlined_call_operand.vmem [shape: s8[2,2,128], index: 1, kind: input, shape index: {}]
  %s2 = inlined_call_operand.hbm [shape: f32[2,8,128], index: 2, kind: output, shape index: {}]
  %s3 = sld [smem:[#allocation0]]
  $region53: #{tpu_custom_call.1} parent=0
    _
  %s5 = ssub.s32 1, %s3
  %s6 = scalar_select 0, %s5, %s3
  $region1: #{tpu_custom_call.1} parent=0
    #allocation4 [shape = 'u8[8192]{0}', space=vmem, size = 0x2000, scoped, tag = 'input window, operand 0']
    #allocation5 [shape = 's32[2]{0}', space=sflag, size = 0x8, scoped, tag = 'scoped memory for tpu_custom_call.1']
    #allocation6 [shape = 's32[2]{0}', space=sflag, size = 0x8, scoped, tag = 'scoped memory for tpu_custom_call.1']
    #allocation7 [shape = 'u8[8192]{0}', space=vmem, size = 0x2000, scoped, tag = 'output window, operand 0']
    %7 = vsyncpa [#allocation5], 0
    %s8 = scalar_lea.sflag [#allocation5], 1
    %9 = vsyncpa %s8, 0
    %10 = vsyncpa [#allocation6], 0
    %s11 = scalar_lea.sflag [#allocation6], 1
    %12 = vsyncpa %s11, 0
    loop: start=0, step=1, limit=4
    $region2: #{tpu_custom_call.1} parent=1 // loop_pre_header
      _
    $region3: #{tpu_custom_call.1} parent=1 // loop_header
      %s14 = sphi 0, %s18
      %p15 = scmp.ge.s32.totalorder %s14, 4
      %s21 = sphi 0, %s33
      %s22 = sphi 0, %s29
      %s23 = sphi 0, %s21
      %s24 = sphi 0, %s22
      %s25 = sphi 0, %s23
      %s26 = sphi 0, %s24
      %s38 = sphi 0, %s40
      %s41 = sphi 0, %s38
      %s42 = sphi 0, %s41
      %s58 = sphi 0, %s42
      %s66 = sphi 0, %s68
      %s69 = sphi 0, %s66
      %s70 = sphi 0, %s69
      %s86 = sphi 0, %s70
      %s92 = sphi 0, %s94
      %s95 = sphi 0, %s92
      %s96 = sphi 0, %s95
      %s112 = sphi 0, %s96
    $region4: #{tpu_custom_call.1} parent=1 // loop_header_branch
      %17 = sbr.rel (%p15) target = $region8
    $region5: #{tpu_custom_call.1} parent=1 // loop_body
      %s19 = ssub.s32 %s14, 1
      %s20 = ssub.s32 %s14, 2
      %s27 = sadd.s32 1, %s22
      %p28 = scmp.ge.s32.totalorder %s27, 1
      %s29 = scalar_select %p28, 0, %s27
      %s30 = sadd.s32 1, %s21
      %s31 = scalar_select %p28, %s30, %s21
      %p32 = scmp.ge.s32.totalorder %s31, 2
      %s33 = scalar_select %p32, 0, %s31
      %s34 = ssub.s32 %s21, %s33
      %s35 = ssub.s32 %s22, %s29
      %s36 = sor.u32 %s34, %s35
      %p37 = scmp.eq.s32.totalorder %s36, 0
      %s39 = sadd.s32 %s38, 1
      %s40 = scalar_select %p37, %s38, %s39
      %p43 = pneg %p37
      %p44 = scmp.eq.s32.totalorder %s14, 1
      %p45 = por %p43, %p44
      %p46 = scmp.ne.s32.totalorder %s38, %s41
      %p47 = scmp.eq.s32.totalorder %s14, 0
      %p48 = por %p46, %p47
      %p49 = scmp.ne.s32.totalorder %s38, %s41
      %p50 = scmp.eq.s32.totalorder %s19, 1
      %p51 = por %p49, %p50
      %p52 = scmp.ne.s32.totalorder %s41, %s42
      %p53 = scmp.eq.s32.totalorder %s19, 0
      %p54 = por %p52, %p53
      %p55 = scmp.ne.s32.totalorder %s41, %s42
      %p56 = scmp.eq.s32.totalorder %s20, 1
      %p57 = por %p55, %p56
      %p59 = scmp.ne.s32.totalorder %s42, %s58
      %p60 = scmp.eq.s32.totalorder %s20, 0
      %p61 = por %p59, %p60
      %s62 = ssub.s32 %s21, %s33
      %s63 = ssub.s32 %s22, %s29
      %s64 = sor.u32 %s62, %s63
      %p65 = scmp.eq.s32.totalorder %s64, 0
      %s67 = sadd.s32 %s66, 1
      %s68 = scalar_select %p65, %s66, %s67
      %p71 = pneg %p65
      %p72 = scmp.eq.s32.totalorder %s14, 1
      %p73 = por %p71, %p72
      %p74 = scmp.ne.s32.totalorder %s66, %s69
      %p75 = scmp.eq.s32.totalorder %s14, 0
      %p76 = por %p74, %p75
      %p77 = scmp.ne.s32.totalorder %s66, %s69
      %p78 = scmp.eq.s32.totalorder %s19, 1
      %p79 = por %p77, %p78
      %p80 = scmp.ne.s32.totalorder %s69, %s70
      %p81 = scmp.eq.s32.totalorder %s19, 0
      %p82 = por %p80, %p81
      %p83 = scmp.ne.s32.totalorder %s69, %s70
      %p84 = scmp.eq.s32.totalorder %s20, 1
      %p85 = por %p83, %p84
      %p87 = scmp.ne.s32.totalorder %s70, %s86
      %p88 = scmp.eq.s32.totalorder %s20, 0
      %p89 = por %p87, %p88
      %s90 = ssub.s32 %s21, %s33
      %p91 = scmp.eq.s32.totalorder %s90, 0
      %s93 = sadd.s32 %s92, 1
      %s94 = scalar_select %p91, %s92, %s93
      %p97 = pneg %p91
      %p98 = scmp.eq.s32.totalorder %s14, 1
      %p99 = por %p97, %p98
      %p100 = scmp.ne.s32.totalorder %s92, %s95
      %p101 = scmp.eq.s32.totalorder %s14, 0
      %p102 = por %p100, %p101
      %p103 = scmp.ne.s32.totalorder %s92, %s95
      %p104 = scmp.eq.s32.totalorder %s19, 1
      %p105 = por %p103, %p104
      %p106 = scmp.ne.s32.totalorder %s95, %s96
      %p107 = scmp.eq.s32.totalorder %s19, 0
      %p108 = por %p106, %p107
      %p109 = scmp.ne.s32.totalorder %s95, %s96
      %p110 = scmp.eq.s32.totalorder %s20, 1
      %p111 = por %p109, %p110
      %p113 = scmp.ne.s32.totalorder %s96, %s112
      %p114 = scmp.eq.s32.totalorder %s20, 0
      %p115 = por %p113, %p114
      %p116 = scmp.le.s32.totalorder 1, %s14
      %p117 = scmp.lt.s32.totalorder %s14, 3
      %p118 = pnand %p116, %p117
      %p119 = pneg %p118
      // Predicated region
      $region9: #{tpu_custom_call.1} parent=5 // pred_check
        _
      $region10: #{tpu_custom_call.1} parent=5 // pred_check_branch
        %121 = sbr.rel (%p118) target = $region12
      $region11: #{tpu_custom_call.1} parent=5 // pred_region
        %s122 = ssub.s32 %s14, 1
      $region12: #{tpu_custom_call.1} parent=5 // pred_fallthru
        _
      %p123 = scmp.lt.s32.totalorder %s14, 2
      // Predicated region
      $region13: #{tpu_custom_call.1} parent=5 // pred_check
        %p124 = pneg %p123
      $region14: #{tpu_custom_call.1} parent=5 // pred_check_branch
        %126 = sbr.rel (%p124) target = $region16
      $region15: #{tpu_custom_call.1} parent=5 // pred_region
        // Predicated region
        $region17: #{tpu_custom_call.1} parent=15 // pred_check
          %p127 = pneg %p48
        $region18: #{tpu_custom_call.1} parent=15 // pred_check_branch
          %129 = sbr.rel (%p127) target = $region20
        $region19: #{tpu_custom_call.1} parent=15 // pred_region
          %s130 = sand.u32 %s38, 1
          %s131 = scalar_lea.sflag [#allocation5], %s130
          %s132 = sand.u32 %s38, 1
          %s133 = smul.addr %s132, 8
          %s134 = scalar_lea.vmem [#allocation4], %s133
          %s136 = ssub.s32 128, 128
          %137 = vsyncadd %s131, %s136
          %s138 = smul.addr %s21, 4
          %s139 = sadd.s32 %s22, %s138
          %s140 = smul.addr %s139, 32
          %s141 = scalar_lea.hbm %s0, %s140
          %s142 = sshll.u32 %s134, 4
          %s143 = int_to_ptr.vmem [resolvable:$true] %s142
          %148 = dma.hbm_to_vmem [thread:$0]  %s141, 128, %s143, %s131, 32, 32, 2
        $region20: #{tpu_custom_call.1} parent=15 // pred_fallthru
          _
        // Predicated region
        $region21: #{tpu_custom_call.1} parent=15 // pred_check
          %p149 = pneg %p76
        $region22: #{tpu_custom_call.1} parent=15 // pred_check_branch
          %151 = sbr.rel (%p149) target = $region24
        $region23: #{tpu_custom_call.1} parent=15 // pred_region
          %p152 = scmp.lt.s32.totalorder %s21, 1
          %s153 = scalar_select %p152, %s21, 1
          %p154 = scmp.lt.s32.totalorder %s22, 0
          %s155 = scalar_select %p154, %s22, 0
          %s156 = sadd.s32 %s155, %s153
          %s157 = scalar_lea.vmem %s1, %s156
        $region24: #{tpu_custom_call.1} parent=15 // pred_fallthru
          _
      $region16: #{tpu_custom_call.1} parent=5 // pred_fallthru
        _
      %p158 = scmp.le.s32.totalorder 1, %s14
      %p159 = scmp.lt.s32.totalorder %s14, 3
      %p160 = pnand %p158, %p159
      %p161 = pneg %p160
      // Predicated region
      $region25: #{tpu_custom_call.1} parent=5 // pred_check
        _
      $region26: #{tpu_custom_call.1} parent=5 // pred_check_branch
        %163 = sbr.rel (%p160) target = $region28
      $region27: #{tpu_custom_call.1} parent=5 // pred_region
        %s164 = ssub.s32 %s14, 1
        %s165 = sand.u32 %s41, 1
        %s166 = scalar_lea.sflag [#allocation5], %s165
        %s167 = sand.u32 %s41, 1
        %s168 = smul.addr %s167, 8
        %s169 = scalar_lea.vmem [#allocation4], %s168
        // Predicated region
        $region29: #{tpu_custom_call.1} parent=27 // pred_check
          %p170 = pneg %p54
        $region30: #{tpu_custom_call.1} parent=27 // pred_check_branch
          %172 = sbr.rel (%p170) target = $region32
        $region31: #{tpu_custom_call.1} parent=27 // pred_region
          %173 = dma.done %s166, 128
        $region32: #{tpu_custom_call.1} parent=27 // pred_fallthru
          _
        %s174 = sand.u32 %s41, 1
        %s175 = scalar_lea.sflag [#allocation5], %s174
        %s176 = sand.u32 %s41, 1
        %s177 = smul.addr %s176, 8
        %s178 = scalar_lea.vmem [#allocation4], %s177
        %p179 = pneg %p54
        %p180 = pneg %p51
        %p181 = scmp.lt.s32.totalorder %s23, 1
        %s182 = scalar_select %p181, %s23, 1
        %p183 = scmp.lt.s32.totalorder %s24, 0
        %s184 = scalar_select %p183, %s24, 0
        %s185 = sadd.s32 %s184, %s182
        %s186 = scalar_lea.vmem %s1, %s185
        %p187 = pneg %p82
        %p188 = pneg %p79
        %p189 = pneg %p108
        %p190 = pneg %p105
        %s191 = sand.u32 %s95, 1
        %s192 = scalar_lea.sflag [#allocation6], %s191
        %s193 = sand.u32 %s95, 1
        %s194 = smul.addr %s193, 8
        %s195 = scalar_lea.vmem [#allocation7], %s194
        %p196 = scmp.lt.s32.totalorder %s23, 1
        %s197 = scalar_select %p196, %s23, 1
        %p198 = scmp.lt.s32.totalorder %s24, 0
        %s199 = scalar_select %p198, %s24, 0
        %s200 = sadd.s32 %s199, %s197
        %s201 = scalar_lea.vmem %s1, %s200
        %p202 = scmp.eq.s32.totalorder %s24, 0
        // Predicated region
        $region33: #{tpu_custom_call.1} parent=27 // pred_check
          %p203 = pneg %p202
        $region34: #{tpu_custom_call.1} parent=27 // pred_check_branch
          %205 = sbr.rel (%p203) target = $region36
        $region35: #{tpu_custom_call.1} parent=27 // pred_region
          %206 = vst [vmem:[#allocation2] sm:$0x1] 0.0
          %207 = vst [vmem:[#allocation2 + $0x1] sm:$0x1] 0.0
          %208 = vst [vmem:[#allocation2 + $0x2] sm:$0x1] 0.0
          %209 = vst [vmem:[#allocation2 + $0x3] sm:$0x1] 0.0
          %210 = vst [vmem:[#allocation3] sm:$0x1] 0.0
          %211 = vst [vmem:[#allocation3 + $0x1] sm:$0x1] 0.0
          %212 = vst [vmem:[#allocation3 + $0x2] sm:$0x1] 0.0
          %213 = vst [vmem:[#allocation3 + $0x3] sm:$0x1] 0.0
        $region36: #{tpu_custom_call.1} parent=27 // pred_fallthru
          _
        %v214 = vld [vmem:[%s169] sm:$0x3]
        %v215 = vld [vmem:[%s169 + $0x2] sm:$0x3]
        %v216 = vld [vmem:[%s169 + $0x4] sm:$0x3]
        %v217 = vld [vmem:[%s169 + $0x6] sm:$0x3]
        %v218 = vld [vmem:[%s201] sm:$0x1]
        %v219 = vunpack.c.0.s8 %v218
        %vm220 = vcmask 1041408
        %v221 = vsel %vm220, %v214, -inf
        %v222 = vsel %vm220, %v215, -inf
        %v223 = vsel %vm220, %v216, -inf
        %v224 = vsel %vm220, %v217, -inf
        %v225 = vmax.f32 %v221, %v222
        %v226 = vmax.f32 %v223, %v224
        %v227 = vmax.f32 %v225, %v226
        %v228 = vsub.f32 %v214, %v227
        %v229 = vsub.f32 %v215, %v227
        %v230 = vsub.f32 %v216, %v227
        %v231 = vsub.f32 %v217, %v227
        %v232 = vmul.f32 %v228, 1.442695
        %v233 = vpow.pop %v232
        %v234 = vmul.f32 %v229, 1.442695
        %v235 = vpow.pop %v234
        %v236 = vmul.f32 %v230, 1.442695
        %v237 = vpow.pop %v236
        %v238 = vmul.f32 %v231, 1.442695
        %v239 = vpow.pop %v238
        %v240 = vsel %vm220, %v233, 0.0
        %v241 = vsel %vm220, %v235, 0.0
        %v242 = vadd.f32 %v240, %v241
        %v243 = vsel %vm220, %v237, 0.0
        %v244 = vadd.f32 %v242, %v243
        %v245 = vsel %vm220, %v239, 0.0
        %v246 = vadd.f32 %v244, %v245
        %v247 = vrcp.pop %v246
        %v248 = vmul.f32 %v233, %v247
        %v249 = vmul.f32 %v235, %v247
        %v250 = vmul.f32 %v237, %v247
        %v251 = vmul.f32 %v239, %v247
        %vm252 = vcmp.eq.s32.totalorder %v219, 0
        %vm253 = vcmp.eq.s32.totalorder %v219, 1
        %vm254 = vcmp.eq.s32.totalorder %v219, 2
        %vm255 = vcmp.eq.s32.totalorder %v219, 3
        %v256 = vsel %vm252, %v248, 0.0
        %v257 = vsel %vm253, %v249, 0.0
        %v258 = vsel %vm254, %v250, 0.0
        %v259 = vsel %vm255, %v251, 0.0
        %v260 = vadd.f32 %v248, 1.0
        %v261 = vadd.f32 %v249, 1.0
        %v262 = vadd.f32 %v250, 1.0
        %v263 = vadd.f32 %v251, 1.0
        %v264 = vsel %vm252, %v260, %v248
        %v265 = vsel %vm253, %v261, %v249
        %v266 = vsel %vm254, %v262, %v250
        %v267 = vsel %vm255, %v263, %v251
        %v268 = vld [vmem:[#allocation2] sm:$0x1]
        %v269 = vld [vmem:[#allocation2 + $0x1] sm:$0x1]
        %v270 = vld [vmem:[#allocation2 + $0x2] sm:$0x1]
        %v271 = vld [vmem:[#allocation2 + $0x3] sm:$0x1]
        %v272 = vsel %vm220, %v256, 0.0
        %v273 = vrot.slane %v272, 4
        %v274 = vadd.f32 %v272, %v273
        %v275 = vrot.slane %v274, 2
        %v276 = vadd.f32 %v274, %v275
        %v277 = vrot.slane %v276, 1
        %v278 = vadd.f32 %v276, %v277
        %v279 = vsel %vm220, %v257, 0.0
        %v280 = vrot.slane %v279, 4
        %v281 = vadd.f32 %v279, %v280
        %v282 = vrot.slane %v281, 2
        %v283 = vadd.f32 %v281, %v282
        %v284 = vrot.slane %v283, 1
        %v285 = vadd.f32 %v283, %v284
        %v286 = vsel %vm220, %v258, 0.0
        %v287 = vrot.slane %v286, 4
        %v288 = vadd.f32 %v286, %v287
        %v289 = vrot.slane %v288, 2
        %v290 = vadd.f32 %v288, %v289
        %v291 = vrot.slane %v290, 1
        %v292 = vadd.f32 %v290, %v291
        %v293 = vsel %vm220, %v259, 0.0
        %v294 = vrot.slane %v293, 4
        %v295 = vadd.f32 %v293, %v294
        %v296 = vrot.slane %v295, 2
        %v297 = vadd.f32 %v295, %v296
        %v298 = vrot.slane %v297, 1
        %v299 = vadd.f32 %v297, %v298
        %v300 = vadd.f32 %v268, %v278
        %v301 = vadd.f32 %v269, %v285
        %v302 = vadd.f32 %v270, %v292
        %v303 = vadd.f32 %v271, %v299
        %304 = vst [vmem:[#allocation2] sm:$0x1] %v300
        %305 = vst [vmem:[#allocation2 + $0x1] sm:$0x1] %v301
        %306 = vst [vmem:[#allocation2 + $0x2] sm:$0x1] %v302
        %307 = vst [vmem:[#allocation2 + $0x3] sm:$0x1] %v303
        %v308 = vld [vmem:[#allocation3] sm:$0x1]
        %v309 = vld [vmem:[#allocation3 + $0x1] sm:$0x1]
        %v310 = vld [vmem:[#allocation3 + $0x2] sm:$0x1]
        %v311 = vld [vmem:[#allocation3 + $0x3] sm:$0x1]
        %v312 = vsel %vm220, %v264, 0.0
        %v313 = vrot.slane %v312, 4
        %v314 = vadd.f32 %v312, %v313
        %v315 = vrot.slane %v314, 2
        %v316 = vadd.f32 %v314, %v315
        %v317 = vrot.slane %v316, 1
        %v318 = vadd.f32 %v316, %v317
        %v319 = vsel %vm220, %v265, 0.0
        %v320 = vrot.slane %v319, 4
        %v321 = vadd.f32 %v319, %v320
        %v322 = vrot.slane %v321, 2
        %v323 = vadd.f32 %v321, %v322
        %v324 = vrot.slane %v323, 1
        %v325 = vadd.f32 %v323, %v324
        %v326 = vsel %vm220, %v266, 0.0
        %v327 = vrot.slane %v326, 4
        %v328 = vadd.f32 %v326, %v327
        %v329 = vrot.slane %v328, 2
        %v330 = vadd.f32 %v328, %v329
        %v331 = vrot.slane %v330, 1
        %v332 = vadd.f32 %v330, %v331
        %v333 = vsel %vm220, %v267, 0.0
        %v334 = vrot.slane %v333, 4
        %v335 = vadd.f32 %v333, %v334
        %v336 = vrot.slane %v335, 2
        %v337 = vadd.f32 %v335, %v336
        %v338 = vrot.slane %v337, 1
        %v339 = vadd.f32 %v337, %v338
        %v340 = vadd.f32 %v308, %v318
        %v341 = vadd.f32 %v309, %v325
        %v342 = vadd.f32 %v310, %v332
        %v343 = vadd.f32 %v311, %v339
        %344 = vst [vmem:[#allocation3] sm:$0x1] %v340
        %345 = vst [vmem:[#allocation3 + $0x1] sm:$0x1] %v341
        %346 = vst [vmem:[#allocation3 + $0x2] sm:$0x1] %v342
        %347 = vst [vmem:[#allocation3 + $0x3] sm:$0x1] %v343
        // Predicated region
        $region37: #{tpu_custom_call.1} parent=27 // pred_check
          %p348 = pneg %p202
        $region38: #{tpu_custom_call.1} parent=27 // pred_check_branch
          %350 = sbr.rel (%p348) target = $region40
        $region39: #{tpu_custom_call.1} parent=27 // pred_region
          %v351 = vld [vmem:[#allocation2] sm:$0x1]
          %v352 = vld [vmem:[#allocation2 + $0x1] sm:$0x1]
          %v353 = vld [vmem:[#allocation2 + $0x2] sm:$0x1]
          %v354 = vld [vmem:[#allocation2 + $0x3] sm:$0x1]
          %v355 = vadd.f32 %v351, 0.0
          %v356 = vadd.f32 %v352, 0.0
          %v357 = vadd.f32 %v353, 0.0
          %v358 = vadd.f32 %v354, 0.0
          %v363 = vcombine.low %v355, %v356
          %v364 = vcombine.low %v357, %v358
          %v366 = vunpack.c.l.s4 1966171168
          %v367 = vunpack.c.0.s8 %v366
          %v368 = vlaneseq
          %v369 = vshrl.u32 %v368, 7
          %v370 = vsub.s32 %v367, %v369
          %v371 = vrot.slane %v363, %v370
          %v373 = vunpack.c.l.s4 1966171168
          %v374 = vunpack.c.0.s8 %v373
          %v375 = vlaneseq
          %v376 = vshrl.u32 %v375, 7
          %v377 = vsub.s32 %v374, %v376
          %v378 = vrot.slane %v364, %v377
          %v379 = vcombine.low %v371, %v378
          %v381 = vunpack.c.l.s4 1966171168
          %v382 = vunpack.c.0.s8 %v381
          %v383 = vlaneseq
          %v384 = vshrl.u32 %v383, 7
          %v385 = vsub.s32 %v382, %v384
          %v386 = vrot.slane %v379, %v385
          %vm388 = vcmask 1043456
          %v389 = vsel %vm388, %v386, 0.0
          %390 = vadd.xlane.f32.xlu0 %v389
          %v391 = vpop.xlane.xlu0 %390
          %v392 = vld [vmem:[#allocation3] sm:$0x1]
          %v393 = vld [vmem:[#allocation3 + $0x1] sm:$0x1]
          %v394 = vld [vmem:[#allocation3 + $0x2] sm:$0x1]
          %v395 = vld [vmem:[#allocation3 + $0x3] sm:$0x1]
          %v396 = vadd.f32 %v392, 0.0
          %v397 = vadd.f32 %v393, 0.0
          %v398 = vadd.f32 %v394, 0.0
          %v399 = vadd.f32 %v395, 0.0
          %v404 = vcombine.low %v396, %v397
          %v405 = vcombine.low %v398, %v399
          %v407 = vunpack.c.l.s4 1966171168
          %v408 = vunpack.c.0.s8 %v407
          %v409 = vlaneseq
          %v410 = vshrl.u32 %v409, 7
          %v411 = vsub.s32 %v408, %v410
          %v412 = vrot.slane %v404, %v411
          %v414 = vunpack.c.l.s4 1966171168
          %v415 = vunpack.c.0.s8 %v414
          %v416 = vlaneseq
          %v417 = vshrl.u32 %v416, 7
          %v418 = vsub.s32 %v415, %v417
          %v419 = vrot.slane %v405, %v418
          %v420 = vcombine.low %v412, %v419
          %v422 = vunpack.c.l.s4 1966171168
          %v423 = vunpack.c.0.s8 %v422
          %v424 = vlaneseq
          %v425 = vshrl.u32 %v424, 7
          %v426 = vsub.s32 %v423, %v425
          %v427 = vrot.slane %v420, %v426
          %v429 = vsel %vm388, %v427, 0.0
          %430 = vadd.xlane.f32.xlu0 %v429
          %v431 = vpop.xlane.xlu0 %430
          %v432 = vmul.f32 %v391, 2.0
          %v433 = vadd.f32 %v432, 1e-06
          %v434 = vadd.f32 %v431, 1e-06
          %v435 = vrcp.pop %v434
          %v436 = vmul.f32 %v433, %v435
          %v437 = vsel %vm388, %v436, 0.0
          %v438 = vrot.slane %v437, 4
          %v439 = vadd.f32 %v437, %v438
          %v440 = vrot.slane %v439, 2
          %v441 = vadd.f32 %v439, %v440
          %v442 = vrot.slane %v441, 1
          %v443 = vadd.f32 %v441, %v442
          %v444 = vmul.f32 %v443, 0.25
          %v445 = vsub.f32 1.0, %v444
          %446 = vst [vmem:[%s195] sm:$0xff] %v445
        $region40: #{tpu_custom_call.1} parent=27 // pred_fallthru
          _
        %s447 = sand.u32 %s95, 1
        %s448 = scalar_lea.sflag [#allocation6], %s447
        %s449 = sand.u32 %s95, 1
        %s450 = smul.addr %s449, 8
        %s451 = scalar_lea.vmem [#allocation7], %s450
        // Predicated region
        $region41: #{tpu_custom_call.1} parent=27 // pred_check
          %p452 = pneg %p105
        $region42: #{tpu_custom_call.1} parent=27 // pred_check_branch
          %454 = sbr.rel (%p452) target = $region44
        $region43: #{tpu_custom_call.1} parent=27 // pred_region
          %s456 = ssub.s32 128, 128
          %457 = vsyncadd %s448, %s456
          %s458 = smul.addr %s23, 128
          %s459 = scalar_lea.hbm %s2, %s458
          %s461 = sshll.u32 %s451, 4
          %s462 = int_to_ptr.vmem [resolvable:$true] %s461
          %464 = dma.vmem_to_hbm [thread:$0]  %s462, 128, %s459, %s448
        $region44: #{tpu_custom_call.1} parent=27 // pred_fallthru
          _
      $region28: #{tpu_custom_call.1} parent=5 // pred_fallthru
        _
      %p465 = scmp.le.s32.totalorder 2, %s14
      // Predicated region
      $region45: #{tpu_custom_call.1} parent=5 // pred_check
        %p466 = pneg %p465
      $region46: #{tpu_custom_call.1} parent=5 // pred_check_branch
        %468 = sbr.rel (%p466) target = $region48
      $region47: #{tpu_custom_call.1} parent=5 // pred_region
        %s469 = ssub.s32 %s14, 2
        // Predicated region
        $region49: #{tpu_custom_call.1} parent=47 // pred_check
          %p470 = pneg %p111
        $region50: #{tpu_custom_call.1} parent=47 // pred_check_branch
          %472 = sbr.rel (%p470) target = $region52
        $region51: #{tpu_custom_call.1} parent=47 // pred_region
          %s473 = sand.u32 %s96, 1
          %s474 = scalar_lea.sflag [#allocation6], %s473
          %s475 = sand.u32 %s96, 1
          %s476 = smul.addr %s475, 8
          %s477 = scalar_lea.vmem [#allocation7], %s476
          %478 = dma.done %s474, 128
        $region52: #{tpu_custom_call.1} parent=47 // pred_fallthru
          _
      $region48: #{tpu_custom_call.1} parent=5 // pred_fallthru
        _
    $region6: #{tpu_custom_call.1} parent=1 // loop_footer
      %s18 = sadd.s32 1, %s14
    $region7: #{tpu_custom_call.1} parent=1 // loop_footer_branch
      %13 = sbr.rel target = $region3
    $region8: #{tpu_custom_call.1} parent=1 // loop_exit
      _
    %479 = vsyncpa [#allocation5], 1
    %s480 = scalar_lea.sflag [#allocation5], 1
    %481 = vsyncpa %s480, 1
    %482 = vsyncpa [#allocation6], 1
    %s483 = scalar_lea.sflag [#allocation6], 1
    %484 = vsyncpa %s483, 1

</llo_original>
